<compile_context>
chip_gen: v7x
topology: tpu7x:2x2x1
jax: 0.10.0
libtpu: 0.0.40
codegen_flags: <defaults>
</compile_context>

<pallas_src>
import jax
import jax.numpy as jnp
from jax.experimental import pallas as pl
from jax.experimental.pallas import tpu as pltpu

HID = 128      # obs_x hidden width, fixed by the module
LANES = 128    # TPU lane width; HID conveniently equals it


def ddpg_critic_kernel(obs_ref, act_ref, p_ref, out_ref):
    """One batch tile: h = relu(obs @ W1^T + b1); q = [action, h] @ Wc^T + bc.

    Packed param layout (rows of p_ref, 128 lanes each):
      [0, K)        : W1^T                       (K, 128)
      K             : b1                          (1, 128)
      K+1           : Wc_x  (critic weights for h)
      [K+2, K+2+A)  : Wc_a / 128, each row lane-replicated   (A, 128)
      K+2+A         : bc / 128, lane-replicated
    The 1/128 scaling makes the single 128-lane reduce of
      t = h*Wc_x + act @ (Wc_a/128) + bc/128
    equal sum(h*Wc_x) + act.Wc_a + bc exactly (one XLU reduce total).
    """
    f32 = jnp.float32
    obs = obs_ref[...]                      # (TB, K)
    act = act_ref[...]                      # (TB, A)  -- raw, un-padded action
    K = obs.shape[-1]
    A = act.shape[-1]

    w1t = p_ref[0:K, :]                     # (K, 128)
    b1 = p_ref[K:K + 1, :]                  # (1, 128)
    wcx = p_ref[K + 1:K + 2, :]             # (1, 128)
    wca = p_ref[K + 2:K + 2 + A, :]         # (A, 128), pre-scaled by 1/HID
    bcs = p_ref[K + 2 + A:K + 3 + A, :]     # (1, 128), bc/HID

    # Main MXU push: full-lane hidden activation.
    h = jnp.dot(obs, w1t, preferred_element_type=f32) + b1
    h = jnp.maximum(h, 0.0)

    # Small MXU push (MXU is otherwise idle): every lane of qa equals
    # (action . Wc_a) / 128, so it folds into the single reduce below.
    qa = jnp.dot(act, wca, preferred_element_type=f32)    # (TB, 128)

    t = h * wcx + qa + bcs                  # VPU only
    out_ref[...] = jnp.sum(t, axis=-1, keepdims=True)     # (TB, 1), one XLU reduce


def init_params(key, obs_space, action_space):
    """Synthetic params honoring the module init (critic weight/bias = 0)."""
    k1, k2 = jax.random.split(key)
    f32 = jnp.float32
    return {
        "W1": 0.1 * jax.random.normal(k1, (HID, obs_space), f32),  # nn.Linear(obs, 128)
        "b1": 0.1 * jax.random.normal(k2, (HID,), f32),
        "Wc": jnp.zeros((1, action_space + HID), f32),             # .fill_(0)
        "bc": jnp.zeros((1,), f32),                                # .fill_(0)
    }


def pack_params(params, action_space):
    """One-time packing into a single (K + A + 3, 128) slab (hoisted off-path)."""
    f32 = jnp.float32
    W1 = jnp.asarray(params["W1"], f32)                  # (128, K)
    K = W1.shape[1]
    A = action_space
    wc = jnp.asarray(params["Wc"], f32)[0]               # (A + 128,)
    bc = jnp.asarray(params["bc"], f32)[0]

    packed = jnp.zeros((K + A + 3, LANES), f32)
    packed = packed.at[0:K, :].set(W1.T)                                  # W1^T
    packed = packed.at[K, :].set(jnp.asarray(params["b1"], f32))          # b1
    packed = packed.at[K + 1, :].set(wc[A:])                              # Wc_x
    # Wc_a, lane-replicated and pre-scaled by 1/HID (cat order: action first).
    packed = packed.at[K + 2:K + 2 + A, :].set(
        jnp.broadcast_to((wc[:A] / HID)[:, None], (A, LANES)))
    packed = packed.at[K + 2 + A, :].set(bc / HID)                        # bc/HID
    return packed


def _round_up(x, m):
    return ((x + m - 1) // m) * m


@jax.jit
def ddpg_critic_forward_pallas(packed, obs_n, action_n):
    B, A = action_n.shape
    K = obs_n.shape[1]
    f32 = jnp.float32
    obs = jnp.asarray(obs_n, f32)
    act = jnp.asarray(action_n, f32)

    # Batch tiling: sublane-aligned (multiple of 8), modest block so VMEM is a
    # non-issue on every generation (incl. v7x's 64 MiB).
    B8 = _round_up(B, 8)
    TB = min(B8, 256)
    Bp = _round_up(B8, TB)
    if Bp != B:   # only pad when the caller's batch is misaligned
        obs = jnp.zeros((Bp, K), f32).at[:B, :].set(obs)
        act = jnp.zeros((Bp, A), f32).at[:B, :].set(act)

    out = pl.pallas_call(
        ddpg_critic_kernel,
        out_shape=jax.ShapeDtypeStruct((Bp, 1), f32),
        grid_spec=pltpu.PrefetchScalarGridSpec(
            num_scalar_prefetch=0,
            grid=(Bp // TB,),
            in_specs=[
                pl.BlockSpec((TB, K), lambda i: (i, 0)),          # obs tile
                pl.BlockSpec((TB, A), lambda i: (i, 0)),          # raw action tile
                pl.BlockSpec(packed.shape, lambda i: (0, 0)),     # params (one block)
            ],
            out_specs=pl.BlockSpec((TB, 1), lambda i: (i, 0)),
        ),
        compiler_params=pltpu.CompilerParams(
            dimension_semantics=("parallel",)),
    )(obs, act, packed)
    return out if Bp == B else out[:B]


def ddpg_critic_ref(params, obs_n, action_n):
    """Pure-JAX reference mirroring the PyTorch forward."""
    x = jax.nn.relu(obs_n @ params["W1"].T + params["b1"])
    cat = jnp.concatenate([action_n, x], axis=1)
    return cat @ params["Wc"].T + params["bc"]


if __name__ == "__main__":
    obs_space, action_space = 16, 8

    key = jax.random.PRNGKey(0)
    k_param, k_obs, k_act, k_wc, k_bc = jax.random.split(key, 5)

    # 1) module as-initialized (critic filled with zeros, per __init__)
    params0 = init_params(k_param, obs_space, action_space)
    # 2) nonzero critic weights so the critic path is actually exercised
    params1 = dict(params0)
    params1["Wc"] = 0.1 * jax.random.normal(k_wc, (1, action_space + HID), jnp.float32)
    params1["bc"] = 0.1 * jax.random.normal(k_bc, (1,), jnp.float32)

    for B in (8, 5):     # aligned batch + the internal pad path
        obs_n = jax.random.normal(k_obs, (B, obs_space), jnp.float32)
        action_n = jax.random.normal(k_act, (B, action_space), jnp.float32)
        for params in (params0, params1):
            packed = pack_params(params, action_space)   # one-time packing (hoisted)
            out = jax.block_until_ready(
                ddpg_critic_forward_pallas(packed, obs_n, action_n))
            ref = ddpg_critic_ref(params, obs_n, action_n)
            assert out.shape == ref.shape == (B, 1), (out.shape, ref.shape)
            assert jnp.allclose(out, ref, atol=1e-4, rtol=1e-4), (out, ref)

    print("KERNEL_OK")
</pallas_src>

<mosaic_0001>
module attributes {stable_mosaic.version = 11 : i64} {
  func.func @ddpg_critic_kernel(%arg0: i32, %arg1: memref<8x16xf32, #tpu.memory_space<vmem>>, %arg2: memref<8x8xf32, #tpu.memory_space<vmem>>, %arg3: memref<27x128xf32, #tpu.memory_space<vmem>>, %arg4: memref<8x1xf32, #tpu.memory_space<vmem>>) attributes {dimension_semantics = [#tpu.dimension_semantics<parallel>], iteration_bounds = array<i64: 1>, scalar_prefetch = 0 : i64, scratch_operands = 0 : i64, tpu.core_type = #tpu.core_type<tc>, window_params = [{transform_indices = @transform_0, window_bounds = array<i64: 8, 16>}, {transform_indices = @transform_1, window_bounds = array<i64: 8, 8>}, {pipeline_mode = #tpu.pipeline_mode<synchronous>, transform_indices = @transform_2, window_bounds = array<i64: 27, 128>}, {transform_indices = @transform_3, window_bounds = array<i64: 8, 1>}]} {
    %c0 = arith.constant 0 : index
    %c0_0 = arith.constant 0 : index
    %0 = vector.load %arg1[%c0, %c0_0] : memref<8x16xf32, #tpu.memory_space<vmem>>, vector<8x16xf32>
    %c0_1 = arith.constant 0 : index
    %c0_2 = arith.constant 0 : index
    %1 = vector.load %arg2[%c0_1, %c0_2] : memref<8x8xf32, #tpu.memory_space<vmem>>, vector<8x8xf32>
    %c0_3 = arith.constant 0 : index
    %c0_4 = arith.constant 0 : index
    %2 = vector.load %arg3[%c0_3, %c0_4] : memref<27x128xf32, #tpu.memory_space<vmem>>, vector<16x128xf32>
    %c16 = arith.constant 16 : index
    %c0_5 = arith.constant 0 : index
    %3 = vector.load %arg3[%c16, %c0_5] : memref<27x128xf32, #tpu.memory_space<vmem>>, vector<1x128xf32>
    %c17 = arith.constant 17 : index
    %c0_6 = arith.constant 0 : index
    %4 = vector.load %arg3[%c17, %c0_6] : memref<27x128xf32, #tpu.memory_space<vmem>>, vector<1x128xf32>
    %c18 = arith.constant 18 : index
    %c0_7 = arith.constant 0 : index
    %5 = vector.load %arg3[%c18, %c0_7] : memref<27x128xf32, #tpu.memory_space<vmem>>, vector<8x128xf32>
    %c26 = arith.constant 26 : index
    %c0_8 = arith.constant 0 : index
    %6 = vector.load %arg3[%c26, %c0_8] : memref<27x128xf32, #tpu.memory_space<vmem>>, vector<1x128xf32>
    %cst = arith.constant dense<0.000000e+00> : vector<8x128xf32>
    %7 = tpu.matmul %0, %2, %cst {dimension_numbers = #tpu.dot_dimension_numbers<[1], [0], [0], [1], [0, 0, 1, 1], [], []>} : vector<8x16xf32>, vector<16x128xf32>, vector<8x128xf32> -> vector<8x128xf32>
    %8 = vector.broadcast %3 : vector<1x128xf32> to vector<8x128xf32>
    %9 = arith.addf %7, %8 : vector<8x128xf32>
    %cst_9 = arith.constant 0.000000e+00 : f32
    %10 = vector.broadcast %cst_9 : f32 to vector<8x128xf32>
    %11 = arith.maximumf %9, %10 : vector<8x128xf32>
    %cst_10 = arith.constant dense<0.000000e+00> : vector<8x128xf32>
    %12 = tpu.matmul %1, %5, %cst_10 {dimension_numbers = #tpu.dot_dimension_numbers<[1], [0], [0], [1], [0, 0, 1, 1], [], []>} : vector<8x8xf32>, vector<8x128xf32>, vector<8x128xf32> -> vector<8x128xf32>
    %13 = vector.broadcast %4 : vector<1x128xf32> to vector<8x128xf32>
    %14 = arith.mulf %11, %13 : vector<8x128xf32>
    %15 = arith.addf %14, %12 : vector<8x128xf32>
    %16 = vector.broadcast %6 : vector<1x128xf32> to vector<8x128xf32>
    %17 = arith.addf %15, %16 : vector<8x128xf32>
    %cst_11 = arith.constant dense<0.000000e+00> : vector<8xf32>
    %18 = vector.multi_reduction <add>, %17, %cst_11 [1] : vector<8x128xf32> to vector<8xf32>
    %19 = vector.shape_cast %18 : vector<8xf32> to vector<8x1xf32>
    %c0_12 = arith.constant 0 : index
    %c0_13 = arith.constant 0 : index
    %20 = vector.load %arg4[%c0_12, %c0_13] : memref<8x1xf32, #tpu.memory_space<vmem>>, vector<8x1xf32>
    tpu.vector_store %arg4[%c0_12, %c0_13], %19 {strides = array<i32>} : memref<8x1xf32, #tpu.memory_space<vmem>>, vector<8x1xf32>,
    return
  }
  func.func @transform_0(%arg0: i32) -> (i32, i32) {
    %c0_i32 = arith.constant 0 : i32
    %c0_i32_0 = arith.constant 0 : i32
    return %arg0, %c0_i32 : i32, i32
  }
  func.func @transform_1(%arg0: i32) -> (i32, i32) {
    %c0_i32 = arith.constant 0 : i32
    %c0_i32_0 = arith.constant 0 : i32
    return %arg0, %c0_i32 : i32, i32
  }
  func.func @transform_2(%arg0: i32) -> (i32, i32) {
    %c0_i32 = arith.constant 0 : i32
    %c0_i32_0 = arith.constant 0 : i32
    %c0_i32_1 = arith.constant 0 : i32
    return %c0_i32, %c0_i32_0 : i32, i32
  }
  func.func @transform_3(%arg0: i32) -> (i32, i32) {
    %c0_i32 = arith.constant 0 : i32
    %c0_i32_0 = arith.constant 0 : i32
    return %arg0, %c0_i32 : i32, i32
  }
}

</mosaic_0001>

<llo_original>
// kernel: ddpg_critic_forward_pallas.1
$region0: #{ddpg_critic_forward_pallas.1}
  #allocation0 [shape = 'u32[]', space=smem, size = 0x4, offset = 0x4, fixed_abs, tag = 'smem constant byte address 0x4 - core index']
  #allocation1 [shape = 'u32[144,128]{1,0:T(1,128)}', space=vmem, size = 0x12000, scoped, tag = 'internal scratch']
  %s0 = inlined_call_operand.hbm [shape: f32[8,16], index: 0, kind: input, shape index: {}]
  %s1 = inlined_call_operand.hbm [shape: f32[8,8], index: 1, kind: input, shape index: {}]
  %s2 = inlined_call_operand.hbm [shape: f32[27,128], index: 2, kind: input, shape index: {}]
  %s3 = inlined_call_operand.vmem [shape: f32[8,1], index: 3, kind: output, shape index: {}]
  %s4 = sld [smem:[#allocation0]]
  $region34: #{ddpg_critic_forward_pallas.1} parent=0
    _
  %s6 = ssub.s32 1, %s4
  %s7 = scalar_select 0, %s6, %s4
  $region1: #{ddpg_critic_forward_pallas.1} parent=0
    #allocation2 [shape = 'u8[4096]{0}', space=vmem, size = 0x1000, scoped, tag = 'input window, operand 0, single buffered']
    #allocation3 [shape = 's32[1]{0}', space=sflag, size = 0x4, scoped, tag = 'scoped memory for ddpg_critic_forward_pallas.1']
    #allocation4 [shape = 'u8[4096]{0}', space=vmem, size = 0x1000, scoped, tag = 'input window, operand 1, single buffered']
    #allocation5 [shape = 's32[1]{0}', space=sflag, size = 0x4, scoped, tag = 'scoped memory for ddpg_critic_forward_pallas.1']
    #allocation6 [shape = 'u8[16384]{0}', space=vmem, size = 0x4000, scoped, tag = 'input window, operand 2, single buffered']
    %8 = vsyncpa [#allocation3], 0
    %9 = vsyncpa [#allocation5], 0
    // Predicated region
    $region2: #{ddpg_critic_forward_pallas.1} parent=1 // pred_check
      _
    $region3: #{ddpg_critic_forward_pallas.1} parent=1 // pred_check_branch
      %11 = sbr.rel (0) target = $region5
    $region4: #{ddpg_critic_forward_pallas.1} parent=1 // pred_region
      %s13 = ssub.s32 128, 128
      %14 = vsyncadd [#allocation3], %s13
      %s16 = sshll.u32 [#allocation2], 4
      %s17 = int_to_ptr.vmem [resolvable:$true] %s16
      %19 = dma.hbm_to_vmem [thread:$0]  %s0, 128, %s17, [#allocation3]
    $region5: #{ddpg_critic_forward_pallas.1} parent=1 // pred_fallthru
      _
    // Predicated region
    $region6: #{ddpg_critic_forward_pallas.1} parent=1 // pred_check
      _
    $region7: #{ddpg_critic_forward_pallas.1} parent=1 // pred_check_branch
      %21 = sbr.rel (0) target = $region9
    $region8: #{ddpg_critic_forward_pallas.1} parent=1 // pred_region
      %s23 = ssub.s32 128, 128
      %24 = vsyncadd [#allocation5], %s23
      %s26 = sshll.u32 [#allocation4], 4
      %s27 = int_to_ptr.vmem [resolvable:$true] %s26
      %29 = dma.hbm_to_vmem [thread:$0]  %s1, 128, %s27, [#allocation5]
    $region9: #{ddpg_critic_forward_pallas.1} parent=1 // pred_fallthru
      _
    // Predicated region
    $region10: #{ddpg_critic_forward_pallas.1} parent=1 // pred_check
      _
    $region11: #{ddpg_critic_forward_pallas.1} parent=1 // pred_check_branch
      %31 = sbr.rel (0) target = $region13
    $region12: #{ddpg_critic_forward_pallas.1} parent=1 // pred_region
      %s33 = ssub.s32 512, 512
      %34 = vsyncadd [#allocation5], %s33
      %s35 = sshll.u32 [#allocation6], 4
      %s36 = int_to_ptr.vmem [resolvable:$true] %s35
      %41 = dma.hbm_to_vmem [thread:$0]  %s2, 512, %s36, [#allocation5], 128, 128, 8
    $region13: #{ddpg_critic_forward_pallas.1} parent=1 // pred_fallthru
      _
    // Predicated region
    $region14: #{ddpg_critic_forward_pallas.1} parent=1 // pred_check
      _
    $region15: #{ddpg_critic_forward_pallas.1} parent=1 // pred_check_branch
      %43 = sbr.rel (0) target = $region17
    $region16: #{ddpg_critic_forward_pallas.1} parent=1 // pred_region
      %44 = dma.done [#allocation3], 128
    $region17: #{ddpg_critic_forward_pallas.1} parent=1 // pred_fallthru
      _
    // Predicated region
    $region18: #{ddpg_critic_forward_pallas.1} parent=1 // pred_check
      _
    $region19: #{ddpg_critic_forward_pallas.1} parent=1 // pred_check_branch
      %46 = sbr.rel (0) target = $region21
    $region20: #{ddpg_critic_forward_pallas.1} parent=1 // pred_region
      %47 = dma.done [#allocation5], 128
    $region21: #{ddpg_critic_forward_pallas.1} parent=1 // pred_fallthru
      _
    // Predicated region
    $region22: #{ddpg_critic_forward_pallas.1} parent=1 // pred_check
      _
    $region23: #{ddpg_critic_forward_pallas.1} parent=1 // pred_check_branch
      %49 = sbr.rel (0) target = $region25
    $region24: #{ddpg_critic_forward_pallas.1} parent=1 // pred_region
      %50 = dma.done [#allocation5], 512
    $region25: #{ddpg_critic_forward_pallas.1} parent=1 // pred_fallthru
      _
    %v51 = vld [vmem:[#allocation2] sm:$0xff]
    %v52 = vld [vmem:[#allocation4] sm:$0xff]
    %v53 = vld [vmem:[#allocation6] sm:$0xff]
    %v54 = vld [vmem:[#allocation6 + $0x8] sm:$0xff]
    %v55 = vld [vmem:[#allocation6 + $0x10] sm:$0x1]
    %v56 = vld [vmem:[#allocation6 + $0x11] sm:$0x1]
    %v57 = vld [vmem:[#allocation6 + $0x12] sm:$0xff]
    %v58 = vld [vmem:[#allocation6 + $0x1a] sm:$0x1]
    %v59 = vlaneseq
    %v60 = vshrl.u32 %v59, 7
    %v61 = vsub.s32 0, %v60
    %v62 = vrot.slane %v55, %v61
    %vm63 = vcmask 130048
    %v65 = vsel %vm63, %v51, 0
    %67 = vmatprep.subr.mxu0 0.0
    %68 = vmatpush1.msra.mxu0 %v53
    %69 = vmatprep.subr.mxu0 0.0
    %70 = vmatpush1.msra.mxu0 %v54
    %71 = vmatprep.subr.mxu0 0.0
    %72 = vmatpush1.msra.mxu0 0.0
    %73 = vmatprep.subr.mxu0 0.0
    %74 = vmatpush1.msra.mxu0 0.0
    %75 = vmatprep.subr.mxu0 0.0
    %76 = vmatpush1.msra.mxu0 0.0
    %77 = vmatprep.subr.mxu0 0.0
    %78 = vmatpush1.msra.mxu0 0.0
    %79 = vmatprep.subr.mxu0 0.0
    %80 = vmatpush1.msra.mxu0 0.0
    %81 = vmatprep.subr.mxu0 0.0
    %82 = vmatpush1.msra.mxu0 0.0
    %83 = vmatprep.subr.mxu0 0.0
    %84 = vmatpush1.msra.mxu0 0.0
    %85 = vmatprep.subr.mxu0 0.0
    %86 = vmatpush1.msra.mxu0 0.0
    %87 = vmatprep.subr.mxu0 0.0
    %88 = vmatpush1.msra.mxu0 0.0
    %89 = vmatprep.subr.mxu0 0.0
    %90 = vmatpush1.msra.mxu0 0.0
    %91 = vmatprep.subr.mxu0 0.0
    %92 = vmatpush1.msra.mxu0 0.0
    %93 = vmatprep.subr.mxu0 0.0
    %94 = vmatpush1.msra.mxu0 0.0
    %95 = vmatprep.subr.mxu0 0.0
    %96 = vmatpush1.msra.mxu0 0.0
    %97 = vmatprep.subr.mxu0 0.0
    %98 = vmatpush1.msra.mxu0 0.0
    %99 = vmatprep.subr.mxu0 0.0
    %100 = vmatpush1.msra.mxu0 0.0
    %101 = vmatprep.subr.mxu0 0.0
    %102 = vmatpush1.msra.mxu0 0.0
    %103 = vmatprep.subr.mxu0 0.0
    %104 = vmatpush1.msra.mxu0 0.0
    %105 = vmatprep.subr.mxu0 0.0
    %106 = vmatpush1.msra.mxu0 0.0
    %107 = vmatprep.subr.mxu0 0.0
    %108 = vmatpush1.msra.mxu0 0.0
    %109 = vmatprep.subr.mxu0 0.0
    %110 = vmatpush1.msra.mxu0 0.0
    %111 = vmatprep.subr.mxu0 0.0
    %112 = vmatpush1.msra.mxu0 0.0
    %113 = vmatprep.subr.mxu0 0.0
    %114 = vmatpush1.msra.mxu0 0.0
    %115 = vmatprep.subr.mxu0 0.0
    %116 = vmatpush1.msra.mxu0 0.0
    %117 = vmatprep.subr.mxu0 0.0
    %118 = vmatpush1.msra.mxu0 0.0
    %119 = vmatprep.subr.mxu0 0.0
    %120 = vmatpush1.msra.mxu0 0.0
    %121 = vmatprep.subr.mxu0 0.0
    %122 = vmatpush1.msra.mxu0 0.0
    %123 = vmatprep.subr.mxu0 0.0
    %124 = vmatpush1.msra.mxu0 0.0
    %125 = vmatprep.subr.mxu0 0.0
    %126 = vmatpush1.msra.mxu0 0.0
    %127 = vmatprep.subr.mxu0 0.0
    %128 = vmatpush1.msra.mxu0 0.0
    %129 = vmatprep.subr.mxu0 0.0
    %130 = vmatpush1.msra.mxu0 0.0
    %131 = vmatprep.mubr.f32.mxu0 0.0
    %132 = vmatmul.mubr.f32.gmra.mrb[0].mxu0 %v65
    %v133 = vpop.f32.mrb[0].mxu0
    %v134 = vadd.f32 %v62, %v133
    %v135 = vpop.f32.mrb[0].mxu0
    %136 = vdwg.mxu0
    %v137 = vmax.f32 %v134, 0.0
    %vm138 = vcmask 64512
    %v140 = vsel %vm138, %v52, 0
    %142 = vmatprep.subr.mxu0 0.0
    %143 = vmatpush1.msra.mxu0 %v57
    %144 = vmatprep.subr.mxu0 0.0
    %145 = vmatpush1.msra.mxu0 0.0
    %146 = vmatprep.subr.mxu0 0.0
    %147 = vmatpush1.msra.mxu0 0.0
    %148 = vmatprep.subr.mxu0 0.0
    %149 = vmatpush1.msra.mxu0 0.0
    %150 = vmatprep.subr.mxu0 0.0
    %151 = vmatpush1.msra.mxu0 0.0
    %152 = vmatprep.subr.mxu0 0.0
    %153 = vmatpush1.msra.mxu0 0.0
    %154 = vmatprep.subr.mxu0 0.0
    %155 = vmatpush1.msra.mxu0 0.0
    %156 = vmatprep.subr.mxu0 0.0
    %157 = vmatpush1.msra.mxu0 0.0
    %158 = vmatprep.subr.mxu0 0.0
    %159 = vmatpush1.msra.mxu0 0.0
    %160 = vmatprep.subr.mxu0 0.0
    %161 = vmatpush1.msra.mxu0 0.0
    %162 = vmatprep.subr.mxu0 0.0
    %163 = vmatpush1.msra.mxu0 0.0
    %164 = vmatprep.subr.mxu0 0.0
    %165 = vmatpush1.msra.mxu0 0.0
    %166 = vmatprep.subr.mxu0 0.0
    %167 = vmatpush1.msra.mxu0 0.0
    %168 = vmatprep.subr.mxu0 0.0
    %169 = vmatpush1.msra.mxu0 0.0
    %170 = vmatprep.subr.mxu0 0.0
    %171 = vmatpush1.msra.mxu0 0.0
    %172 = vmatprep.subr.mxu0 0.0
    %173 = vmatpush1.msra.mxu0 0.0
    %174 = vmatprep.subr.mxu0 0.0
    %175 = vmatpush1.msra.mxu0 0.0
    %176 = vmatprep.subr.mxu0 0.0
    %177 = vmatpush1.msra.mxu0 0.0
    %178 = vmatprep.subr.mxu0 0.0
    %179 = vmatpush1.msra.mxu0 0.0
    %180 = vmatprep.subr.mxu0 0.0
    %181 = vmatpush1.msra.mxu0 0.0
    %182 = vmatprep.subr.mxu0 0.0
    %183 = vmatpush1.msra.mxu0 0.0
    %184 = vmatprep.subr.mxu0 0.0
    %185 = vmatpush1.msra.mxu0 0.0
    %186 = vmatprep.subr.mxu0 0.0
    %187 = vmatpush1.msra.mxu0 0.0
    %188 = vmatprep.subr.mxu0 0.0
    %189 = vmatpush1.msra.mxu0 0.0
    %190 = vmatprep.subr.mxu0 0.0
    %191 = vmatpush1.msra.mxu0 0.0
    %192 = vmatprep.subr.mxu0 0.0
    %193 = vmatpush1.msra.mxu0 0.0
    %194 = vmatprep.subr.mxu0 0.0
    %195 = vmatpush1.msra.mxu0 0.0
    %196 = vmatprep.subr.mxu0 0.0
    %197 = vmatpush1.msra.mxu0 0.0
    %198 = vmatprep.subr.mxu0 0.0
    %199 = vmatpush1.msra.mxu0 0.0
    %200 = vmatprep.subr.mxu0 0.0
    %201 = vmatpush1.msra.mxu0 0.0
    %202 = vmatprep.subr.mxu0 0.0
    %203 = vmatpush1.msra.mxu0 0.0
    %204 = vmatprep.subr.mxu0 0.0
    %205 = vmatpush1.msra.mxu0 0.0
    %206 = vmatprep.mubr.f32.mxu0 0.0
    %207 = vmatmul.mubr.f32.gmra.mrb[0].mxu0 %v140
    %v208 = vpop.f32.mrb[0].mxu0
    %v209 = vadd.f32 0.0, %v208
    %v210 = vpop.f32.mrb[0].mxu0
    %211 = vdwg.mxu0
    %v212 = vlaneseq
    %v213 = vshrl.u32 %v212, 7
    %v214 = vsub.s32 0, %v213
    %v215 = vrot.slane %v56, %v214
    %v216 = vmul.f32 %v137, %v215
    %v217 = vadd.f32 %v216, %v209
    %v218 = vlaneseq
    %v219 = vshrl.u32 %v218, 7
    %v220 = vsub.s32 0, %v219
    %v221 = vrot.slane %v58, %v220
    %v222 = vadd.f32 %v217, %v221
    %223 = vadd.xlane.f32.xlu0 %v222
    %v224 = vpop.xlane.xlu0 %223
    %vm225 = vcmask 7168
    %226 = vst.msk [vmem:[%s3] sm:$0xff] %vm225, %v224
    // Predicated region
    $region26: #{ddpg_critic_forward_pallas.1} parent=1 // pred_check
      _
    $region27: #{ddpg_critic_forward_pallas.1} parent=1 // pred_check_branch
      %228 = sbr.rel (0) target = $region29
    $region28: #{ddpg_critic_forward_pallas.1} parent=1 // pred_region
      _
    $region29: #{ddpg_critic_forward_pallas.1} parent=1 // pred_fallthru
      _
    // Predicated region
    $region30: #{ddpg_critic_forward_pallas.1} parent=1 // pred_check
      _
    $region31: #{ddpg_critic_forward_pallas.1} parent=1 // pred_check_branch
      %230 = sbr.rel (0) target = $region33
    $region32: #{ddpg_critic_forward_pallas.1} parent=1 // pred_region
      _
    $region33: #{ddpg_critic_forward_pallas.1} parent=1 // pred_fallthru
      _
    %231 = vsyncpa [#allocation3], 1
    %232 = vsyncpa [#allocation5], 1

</llo_original>
